<compile_context>
chip_gen: v5e
topology: v5e:2x2
jax: 0.10.0
libtpu: 0.0.40
codegen_flags: <defaults>
</compile_context>

<pallas_src>
import functools

import jax
import jax.numpy as jnp
from jax import lax
from jax.experimental import pallas as pl
from jax.experimental.pallas import tpu as pltpu


def _make_kernel(n, pp, cout):
    """Kernel factory closing over static shape constants."""

    def kernel(p_ref, wc_ref, wl_ref, bl_ref, o_ref):
        # Conv2d (im2col form) + bias as a single 2-D MXU matmul, then ReLU.
        # p_ref: (n*pp, K+1) -- last column is the validity indicator, so the
        # bias (last row of wc_ref) is only added on real rows; pad rows are 0.
        act = jnp.maximum(
            jnp.dot(p_ref[...], wc_ref[...],
                    preferred_element_type=jnp.float32),
            0.0)                                            # (n*pp, cout)
        # AdaptiveAvgPool2d((1,1)) + Flatten: per-sample sum over spatial rows.
        # pp % 8 == 0, so this reshape is sublane-aligned (no copy).
        # The 1/P normalization is folded into wl in the wrapper.
        pooled = act.reshape(n, pp, cout).sum(axis=1)       # (n, cout)
        # Linear head (Dout padded to 128 lanes -> full unmasked store).
        o_ref[...] = (jnp.dot(pooled, wl_ref[...],
                              preferred_element_type=jnp.float32)
                      + bl_ref[...]).astype(o_ref.dtype)

    return kernel


def _round_up(v, m):
    return (v + m - 1) // m * m


def _model_forward(x, conv_w, conv_b, lin_w, lin_b):
    """x: (N, Cin, H, W) f32; conv_w: (Cout, Cin, KH, KW); conv_b: (Cout,);
    lin_w: (Dout, Cout) [torch Linear layout]; lin_b: (Dout,)."""
    N, C, H, W = x.shape
    Cout, Cin, KH, KW = conv_w.shape
    Dout = lin_w.shape[0]
    Ho, Wo = H - KH + 1, W - KW + 1
    P, K = Ho * Wo, Cin * KH * KW
    PP = _round_up(P, 8)            # sublane-aligned spatial rows per sample
    DOUT_P = _round_up(Dout, 128)   # lane-dense head output

    x = x.astype(jnp.float32)

    # ---- im2col (XLA glue, fused under jit) ----
    cols = []
    for i in range(KH):
        for j in range(KW):
            cols.append(x[:, :, i:i + Ho, j:j + Wo])          # (N, C, Ho, Wo)
    patches = jnp.stack(cols, axis=2)                         # (N, C, KH*KW, Ho, Wo)
    patches = patches.reshape(N, K, P).transpose(0, 2, 1)     # (N, P, K)

    # Validity column (folds conv bias into the matmul) + pad P -> PP with zeros.
    ones_col = jnp.ones((N, P, 1), jnp.float32)
    patches = jnp.concatenate([patches, ones_col], axis=-1)   # (N, P, K+1)
    patches = jnp.pad(patches, ((0, 0), (0, PP - P), (0, 0))) # (N, PP, K+1)
    flat = patches.reshape(N * PP, K + 1)                     # (N*PP, K+1)

    # Conv weight with bias folded in as the last row.
    wc = jnp.concatenate(
        [conv_w.reshape(Cout, K).T.astype(jnp.float32),
         conv_b.reshape(1, Cout).astype(jnp.float32)], axis=0)  # (K+1, Cout)

    # Head weight: fold 1/P of the average pool; pad Dout to 128 lanes.
    wl = lin_w.T.astype(jnp.float32) / float(P)                 # (Cout, Dout)
    wl = jnp.pad(wl, ((0, 0), (0, DOUT_P - Dout)))              # (Cout, DOUT_P)
    bl = jnp.pad(lin_b.reshape(1, Dout).astype(jnp.float32),
                 ((0, 0), (0, DOUT_P - Dout)))                  # (1, DOUT_P)

    flops = (2 * (N * PP) * (K + 1) * Cout        # conv matmul
             + 2 * N * PP * Cout                  # relu + pool
             + 2 * N * Cout * DOUT_P)             # head matmul
    bytes_accessed = 4 * (flat.size + wc.size + wl.size + bl.size + N * DOUT_P)

    vmem = functools.partial(pl.BlockSpec, memory_space=pltpu.MemorySpace.VMEM)
    out = pl.pallas_call(
        _make_kernel(N, PP, Cout),
        out_shape=jax.ShapeDtypeStruct((N, DOUT_P), jnp.float32),
        in_specs=[vmem(), vmem(), vmem(), vmem()],
        out_specs=vmem(),
        cost_estimate=pl.CostEstimate(flops=flops, transcendentals=0,
                                      bytes_accessed=bytes_accessed),
    )(flat, wc, wl, bl)
    return out[:, :Dout]


model_forward = jax.jit(_model_forward)


if __name__ == "__main__":
    key = jax.random.PRNGKey(0)
    k_x, k_cw, k_cb, k_lw, k_lb = jax.random.split(key, 5)

    # Small shapes consistent with the module: batch=2, Cin=3, 16x16 images.
    N, Cin, H, W = 2, 3, 16, 16
    Cout, KH, KW = 64, 3, 3
    Dout = 10

    x = jax.random.normal(k_x, (N, Cin, H, W), dtype=jnp.float32)
    conv_w = jax.random.normal(k_cw, (Cout, Cin, KH, KW), dtype=jnp.float32) * 0.05
    conv_b = jax.random.normal(k_cb, (Cout,), dtype=jnp.float32) * 0.05
    lin_w = jax.random.normal(k_lw, (Dout, Cout), dtype=jnp.float32) * 0.05
    lin_b = jax.random.normal(k_lb, (Dout,), dtype=jnp.float32) * 0.05

    out = model_forward(x, conv_w, conv_b, lin_w, lin_b)
    out = jax.block_until_ready(out)

    # Sanity check against a plain-JAX reference of the same forward pass.
    ref_conv = lax.conv_general_dilated(
        x, conv_w, window_strides=(1, 1), padding="VALID",
        dimension_numbers=("NCHW", "OIHW", "NCHW"))
    ref_act = jnp.maximum(ref_conv + conv_b[None, :, None, None], 0.0)
    ref_pool = ref_act.mean(axis=(2, 3))                  # (N, Cout)
    ref_out = ref_pool @ lin_w.T + lin_b                  # (N, Dout)

    assert out.shape == (N, Dout)
    assert jnp.allclose(out, ref_out, atol=1e-4, rtol=1e-4)
    print("KERNEL_OK")
</pallas_src>

<mosaic_0001>
module attributes {stable_mosaic.version = 11 : i64} {
  func.func @kernel(%arg0: memref<400x28xf32, #tpu.memory_space<vmem>>, %arg1: memref<28x64xf32, #tpu.memory_space<vmem>>, %arg2: memref<64x128xf32, #tpu.memory_space<vmem>>, %arg3: memref<1x128xf32, #tpu.memory_space<vmem>>, %arg4: memref<2x128xf32, #tpu.memory_space<vmem>>) attributes {dimension_semantics = [], scalar_prefetch = 0 : i64, scratch_operands = 0 : i64, tpu.core_type = #tpu.core_type<tc>} {
    %c0 = arith.constant 0 : index
    %c0_0 = arith.constant 0 : index
    %0 = vector.load %arg0[%c0, %c0_0] : memref<400x28xf32, #tpu.memory_space<vmem>>, vector<400x28xf32>
    %c0_1 = arith.constant 0 : index
    %c0_2 = arith.constant 0 : index
    %1 = vector.load %arg1[%c0_1, %c0_2] : memref<28x64xf32, #tpu.memory_space<vmem>>, vector<28x64xf32>
    %cst = arith.constant dense<0.000000e+00> : vector<400x64xf32>
    %2 = tpu.matmul %0, %1, %cst {dimension_numbers = #tpu.dot_dimension_numbers<[1], [0], [0], [1], [0, 0, 1, 1], [], []>} : vector<400x28xf32>, vector<28x64xf32>, vector<400x64xf32> -> vector<400x64xf32>
    %cst_3 = arith.constant 0.000000e+00 : f32
    %3 = vector.broadcast %cst_3 : f32 to vector<400x64xf32>
    %4 = arith.maximumf %2, %3 : vector<400x64xf32>
    %5 = vector.shape_cast %4 : vector<400x64xf32> to vector<2x200x64xf32>
    %cst_4 = arith.constant dense<0.000000e+00> : vector<2x64xf32>
    %6 = vector.multi_reduction <add>, %5, %cst_4 [1] : vector<2x200x64xf32> to vector<2x64xf32>
    %c0_5 = arith.constant 0 : index
    %c0_6 = arith.constant 0 : index
    %7 = vector.load %arg2[%c0_5, %c0_6] : memref<64x128xf32, #tpu.memory_space<vmem>>, vector<64x128xf32>
    %cst_7 = arith.constant dense<0.000000e+00> : vector<2x128xf32>
    %8 = tpu.matmul %6, %7, %cst_7 {dimension_numbers = #tpu.dot_dimension_numbers<[1], [0], [0], [1], [0, 0, 1, 1], [], []>} : vector<2x64xf32>, vector<64x128xf32>, vector<2x128xf32> -> vector<2x128xf32>
    %c0_8 = arith.constant 0 : index
    %c0_9 = arith.constant 0 : index
    %9 = vector.load %arg3[%c0_8, %c0_9] : memref<1x128xf32, #tpu.memory_space<vmem>>, vector<1x128xf32>
    %10 = vector.broadcast %9 : vector<1x128xf32> to vector<2x128xf32>
    %11 = arith.addf %8, %10 : vector<2x128xf32>
    %c0_10 = arith.constant 0 : index
    %c0_11 = arith.constant 0 : index
    %12 = vector.load %arg4[%c0_10, %c0_11] : memref<2x128xf32, #tpu.memory_space<vmem>>, vector<2x128xf32>
    tpu.vector_store %arg4[%c0_10, %c0_11], %11 {strides = array<i32>} : memref<2x128xf32, #tpu.memory_space<vmem>>, vector<2x128xf32>,
    return
  }
}

</mosaic_0001>

<llo_original>
// kernel: _model_forward.1
$region0: #{_model_forward.1}
  #allocation0 [shape = 'u32[]', space=smem, size = 0x4, offset = 0x4, fixed_abs, tag = 'smem constant byte address 0x4 - core index']
  #allocation1 [shape = 'u32[72,128]{1,0:T(1,128)}', space=vmem, size = 0x9000, scoped, tag = 'internal scratch']
  %s0 = inlined_call_operand.vmem [shape: f32[400,28], index: 0, kind: input, shape index: {}]
  %s1 = inlined_call_operand.vmem [shape: f32[28,64], index: 1, kind: input, shape index: {}]
  %s2 = inlined_call_operand.vmem [shape: f32[64,128], index: 2, kind: input, shape index: {}]
  %s3 = inlined_call_operand.vmem [shape: f32[1,128], index: 3, kind: input, shape index: {}]
  %s4 = inlined_call_operand.hbm [shape: f32[2,128], index: 4, kind: output, shape index: {}]
  %s5 = sld [smem:[#allocation0]]
  $region26: #{_model_forward.1} parent=0
    _
  %s7 = ssub.s32 1, %s5
  %s8 = scalar_select 0, %s7, %s5
  $region1: #{_model_forward.1} parent=0
    #allocation2 [shape = 'u8[1024]{0}', space=vmem, size = 0x400, scoped, tag = 'output window, operand 0, single buffered']
    #allocation3 [shape = 's32[1]{0}', space=sflag, size = 0x4, scoped, tag = 'scoped memory for _model_forward.1']
    %9 = vsyncpa [#allocation3], 0
    // Predicated region
    $region2: #{_model_forward.1} parent=1 // pred_check
      _
    $region3: #{_model_forward.1} parent=1 // pred_check_branch
      %11 = sbr.rel (0) target = $region5
    $region4: #{_model_forward.1} parent=1 // pred_region
      _
    $region5: #{_model_forward.1} parent=1 // pred_fallthru
      _
    // Predicated region
    $region6: #{_model_forward.1} parent=1 // pred_check
      _
    $region7: #{_model_forward.1} parent=1 // pred_check_branch
      %13 = sbr.rel (0) target = $region9
    $region8: #{_model_forward.1} parent=1 // pred_region
      _
    $region9: #{_model_forward.1} parent=1 // pred_fallthru
      _
    // Predicated region
    $region10: #{_model_forward.1} parent=1 // pred_check
      _
    $region11: #{_model_forward.1} parent=1 // pred_check_branch
      %15 = sbr.rel (0) target = $region13
    $region12: #{_model_forward.1} parent=1 // pred_region
      _
    $region13: #{_model_forward.1} parent=1 // pred_fallthru
      _
    // Predicated region
    $region14: #{_model_forward.1} parent=1 // pred_check
      _
    $region15: #{_model_forward.1} parent=1 // pred_check_branch
      %17 = sbr.rel (0) target = $region17
    $region16: #{_model_forward.1} parent=1 // pred_region
      _
    $region17: #{_model_forward.1} parent=1 // pred_fallthru
      _
    %v18 = vld [vmem:[%s0] sm:$0xff]
    %v19 = vld [vmem:[%s0 + $0x8] sm:$0xff]
    %v20 = vld [vmem:[%s0 + $0x10] sm:$0xff]
    %v21 = vld [vmem:[%s0 + $0x18] sm:$0xff]
    %v22 = vld [vmem:[%s0 + $0x20] sm:$0xff]
    %v23 = vld [vmem:[%s0 + $0x28] sm:$0xff]
    %v24 = vld [vmem:[%s0 + $0x30] sm:$0xff]
    %v25 = vld [vmem:[%s0 + $0x38] sm:$0xff]
    %v26 = vld [vmem:[%s0 + $0x40] sm:$0xff]
    %v27 = vld [vmem:[%s0 + $0x48] sm:$0xff]
    %v28 = vld [vmem:[%s0 + $0x50] sm:$0xff]
    %v29 = vld [vmem:[%s0 + $0x58] sm:$0xff]
    %v30 = vld [vmem:[%s0 + $0x60] sm:$0xff]
    %v31 = vld [vmem:[%s0 + $0x68] sm:$0xff]
    %v32 = vld [vmem:[%s0 + $0x70] sm:$0xff]
    %v33 = vld [vmem:[%s0 + $0x78] sm:$0xff]
    %v34 = vld [vmem:[%s0 + $0x80] sm:$0xff]
    %v35 = vld [vmem:[%s0 + $0x88] sm:$0xff]
    %v36 = vld [vmem:[%s0 + $0x90] sm:$0xff]
    %v37 = vld [vmem:[%s0 + $0x98] sm:$0xff]
    %v38 = vld [vmem:[%s0 + $0xa0] sm:$0xff]
    %v39 = vld [vmem:[%s0 + $0xa8] sm:$0xff]
    %v40 = vld [vmem:[%s0 + $0xb0] sm:$0xff]
    %v41 = vld [vmem:[%s0 + $0xb8] sm:$0xff]
    %v42 = vld [vmem:[%s0 + $0xc0] sm:$0xff]
    %v43 = vld [vmem:[%s0 + $0xc8] sm:$0xff]
    %v44 = vld [vmem:[%s0 + $0xd0] sm:$0xff]
    %v45 = vld [vmem:[%s0 + $0xd8] sm:$0xff]
    %v46 = vld [vmem:[%s0 + $0xe0] sm:$0xff]
    %v47 = vld [vmem:[%s0 + $0xe8] sm:$0xff]
    %v48 = vld [vmem:[%s0 + $0xf0] sm:$0xff]
    %v49 = vld [vmem:[%s0 + $0xf8] sm:$0xff]
    %v50 = vld [vmem:[%s0 + $0x100] sm:$0xff]
    %v51 = vld [vmem:[%s0 + $0x108] sm:$0xff]
    %v52 = vld [vmem:[%s0 + $0x110] sm:$0xff]
    %v53 = vld [vmem:[%s0 + $0x118] sm:$0xff]
    %v54 = vld [vmem:[%s0 + $0x120] sm:$0xff]
    %v55 = vld [vmem:[%s0 + $0x128] sm:$0xff]
    %v56 = vld [vmem:[%s0 + $0x130] sm:$0xff]
    %v57 = vld [vmem:[%s0 + $0x138] sm:$0xff]
    %v58 = vld [vmem:[%s0 + $0x140] sm:$0xff]
    %v59 = vld [vmem:[%s0 + $0x148] sm:$0xff]
    %v60 = vld [vmem:[%s0 + $0x150] sm:$0xff]
    %v61 = vld [vmem:[%s0 + $0x158] sm:$0xff]
    %v62 = vld [vmem:[%s0 + $0x160] sm:$0xff]
    %v63 = vld [vmem:[%s0 + $0x168] sm:$0xff]
    %v64 = vld [vmem:[%s0 + $0x170] sm:$0xff]
    %v65 = vld [vmem:[%s0 + $0x178] sm:$0xff]
    %v66 = vld [vmem:[%s0 + $0x180] sm:$0xff]
    %v67 = vld [vmem:[%s0 + $0x188] sm:$0xff]
    %v68 = vld [vmem:[%s1] sm:$0xff]
    %v69 = vld [vmem:[%s1 + $0x8] sm:$0xff]
    %v70 = vld [vmem:[%s1 + $0x10] sm:$0xff]
    %v71 = vld [vmem:[%s1 + $0x18] sm:$0xf]
    %vm72 = vcmask 228352
    %v74 = vsel %vm72, %v18, 0
    %v77 = vsel %vm72, %v19, 0
    %v80 = vsel %vm72, %v20, 0
    %v83 = vsel %vm72, %v21, 0
    %v86 = vsel %vm72, %v22, 0
    %v89 = vsel %vm72, %v23, 0
    %v92 = vsel %vm72, %v24, 0
    %v95 = vsel %vm72, %v25, 0
    %v98 = vsel %vm72, %v26, 0
    %v101 = vsel %vm72, %v27, 0
    %v104 = vsel %vm72, %v28, 0
    %v107 = vsel %vm72, %v29, 0
    %v110 = vsel %vm72, %v30, 0
    %v113 = vsel %vm72, %v31, 0
    %v116 = vsel %vm72, %v32, 0
    %v119 = vsel %vm72, %v33, 0
    %v122 = vsel %vm72, %v34, 0
    %v125 = vsel %vm72, %v35, 0
    %v128 = vsel %vm72, %v36, 0
    %v131 = vsel %vm72, %v37, 0
    %v134 = vsel %vm72, %v38, 0
    %v137 = vsel %vm72, %v39, 0
    %v140 = vsel %vm72, %v40, 0
    %v143 = vsel %vm72, %v41, 0
    %v146 = vsel %vm72, %v42, 0
    %v149 = vsel %vm72, %v43, 0
    %v152 = vsel %vm72, %v44, 0
    %v155 = vsel %vm72, %v45, 0
    %v158 = vsel %vm72, %v46, 0
    %v161 = vsel %vm72, %v47, 0
    %v164 = vsel %vm72, %v48, 0
    %v167 = vsel %vm72, %v49, 0
    %v170 = vsel %vm72, %v50, 0
    %v173 = vsel %vm72, %v51, 0
    %v176 = vsel %vm72, %v52, 0
    %v179 = vsel %vm72, %v53, 0
    %v182 = vsel %vm72, %v54, 0
    %v185 = vsel %vm72, %v55, 0
    %v188 = vsel %vm72, %v56, 0
    %v191 = vsel %vm72, %v57, 0
    %v194 = vsel %vm72, %v58, 0
    %v197 = vsel %vm72, %v59, 0
    %v200 = vsel %vm72, %v60, 0
    %v203 = vsel %vm72, %v61, 0
    %v206 = vsel %vm72, %v62, 0
    %v209 = vsel %vm72, %v63, 0
    %v212 = vsel %vm72, %v64, 0
    %v215 = vsel %vm72, %v65, 0
    %v218 = vsel %vm72, %v66, 0
    %v221 = vsel %vm72, %v67, 0
    %vm223 = vcmask 1043456
    %v225 = vsel %vm223, %v71, 0
    %227 = vmatpush.msra.mxu0 0.0
    %228 = vmatpush.msra.mxu0 0.0
    %229 = vmatpush.msra.mxu0 0.0
    %230 = vmatpush.msra.mxu0 0.0
    %231 = vmatpush.msra.mxu0 0.0
    %232 = vmatpush.msra.mxu0 0.0
    %233 = vmatpush.msra.mxu0 0.0
    %234 = vmatpush.msra.mxu0 0.0
    %235 = vmatpush.msra.mxu0 0.0
    %236 = vmatpush.msra.mxu0 0.0
    %237 = vmatpush.msra.mxu0 0.0
    %238 = vmatpush.msra.mxu0 0.0
    %239 = vmatpush.msra.mxu0 %v225
    %240 = vmatpush.msra.mxu0 %v70
    %241 = vmatpush.msra.mxu0 %v69
    %242 = vmatpush.msra.mxu0 %v68
    %243 = vmatmul.f32.gmra.mxu0 %v74
    %v244 = vpop.f32.mrf.mxu0
    %v245 = vadd.f32 0.0, %v244
    %246 = vmatmul.f32.gmra.mxu0 %v77
    %v247 = vpop.f32.mrf.mxu0
    %v248 = vadd.f32 0.0, %v247
    %249 = vmatmul.f32.gmra.mxu0 %v80
    %v250 = vpop.f32.mrf.mxu0
    %v251 = vadd.f32 0.0, %v250
    %252 = vmatmul.f32.gmra.mxu0 %v83
    %v253 = vpop.f32.mrf.mxu0
    %v254 = vadd.f32 0.0, %v253
    %255 = vmatmul.f32.gmra.mxu0 %v86
    %v256 = vpop.f32.mrf.mxu0
    %v257 = vadd.f32 0.0, %v256
    %258 = vmatmul.f32.gmra.mxu0 %v89
    %v259 = vpop.f32.mrf.mxu0
    %v260 = vadd.f32 0.0, %v259
    %261 = vmatmul.f32.gmra.mxu0 %v92
    %v262 = vpop.f32.mrf.mxu0
    %v263 = vadd.f32 0.0, %v262
    %264 = vmatmul.f32.gmra.mxu0 %v95
    %v265 = vpop.f32.mrf.mxu0
    %v266 = vadd.f32 0.0, %v265
    %267 = vmatmul.f32.gmra.mxu0 %v98
    %v268 = vpop.f32.mrf.mxu0
    %v269 = vadd.f32 0.0, %v268
    %270 = vmatmul.f32.gmra.mxu0 %v101
    %v271 = vpop.f32.mrf.mxu0
    %v272 = vadd.f32 0.0, %v271
    %273 = vmatmul.f32.gmra.mxu0 %v104
    %v274 = vpop.f32.mrf.mxu0
    %v275 = vadd.f32 0.0, %v274
    %276 = vmatmul.f32.gmra.mxu0 %v107
    %v277 = vpop.f32.mrf.mxu0
    %v278 = vadd.f32 0.0, %v277
    %279 = vmatmul.f32.gmra.mxu0 %v110
    %v280 = vpop.f32.mrf.mxu0
    %v281 = vadd.f32 0.0, %v280
    %282 = vmatmul.f32.gmra.mxu0 %v113
    %v283 = vpop.f32.mrf.mxu0
    %v284 = vadd.f32 0.0, %v283
    %285 = vmatmul.f32.gmra.mxu0 %v116
    %v286 = vpop.f32.mrf.mxu0
    %v287 = vadd.f32 0.0, %v286
    %288 = vmatmul.f32.gmra.mxu0 %v119
    %v289 = vpop.f32.mrf.mxu0
    %v290 = vadd.f32 0.0, %v289
    %291 = vmatmul.f32.gmra.mxu0 %v122
    %v292 = vpop.f32.mrf.mxu0
    %v293 = vadd.f32 0.0, %v292
    %294 = vmatmul.f32.gmra.mxu0 %v125
    %v295 = vpop.f32.mrf.mxu0
    %v296 = vadd.f32 0.0, %v295
    %297 = vmatmul.f32.gmra.mxu0 %v128
    %v298 = vpop.f32.mrf.mxu0
    %v299 = vadd.f32 0.0, %v298
    %300 = vmatmul.f32.gmra.mxu0 %v131
    %v301 = vpop.f32.mrf.mxu0
    %v302 = vadd.f32 0.0, %v301
    %303 = vmatmul.f32.gmra.mxu0 %v134
    %v304 = vpop.f32.mrf.mxu0
    %v305 = vadd.f32 0.0, %v304
    %306 = vmatmul.f32.gmra.mxu0 %v137
    %v307 = vpop.f32.mrf.mxu0
    %v308 = vadd.f32 0.0, %v307
    %309 = vmatmul.f32.gmra.mxu0 %v140
    %v310 = vpop.f32.mrf.mxu0
    %v311 = vadd.f32 0.0, %v310
    %312 = vmatmul.f32.gmra.mxu0 %v143
    %v313 = vpop.f32.mrf.mxu0
    %v314 = vadd.f32 0.0, %v313
    %315 = vmatmul.f32.gmra.mxu0 %v146
    %v316 = vpop.f32.mrf.mxu0
    %v317 = vadd.f32 0.0, %v316
    %318 = vmatmul.f32.gmra.mxu0 %v149
    %v319 = vpop.f32.mrf.mxu0
    %v320 = vadd.f32 0.0, %v319
    %321 = vmatmul.f32.gmra.mxu0 %v152
    %v322 = vpop.f32.mrf.mxu0
    %v323 = vadd.f32 0.0, %v322
    %324 = vmatmul.f32.gmra.mxu0 %v155
    %v325 = vpop.f32.mrf.mxu0
    %v326 = vadd.f32 0.0, %v325
    %327 = vmatmul.f32.gmra.mxu0 %v158
    %v328 = vpop.f32.mrf.mxu0
    %v329 = vadd.f32 0.0, %v328
    %330 = vmatmul.f32.gmra.mxu0 %v161
    %v331 = vpop.f32.mrf.mxu0
    %v332 = vadd.f32 0.0, %v331
    %333 = vmatmul.f32.gmra.mxu0 %v164
    %v334 = vpop.f32.mrf.mxu0
    %v335 = vadd.f32 0.0, %v334
    %336 = vmatmul.f32.gmra.mxu0 %v167
    %v337 = vpop.f32.mrf.mxu0
    %v338 = vadd.f32 0.0, %v337
    %339 = vmatmul.f32.gmra.mxu0 %v170
    %v340 = vpop.f32.mrf.mxu0
    %v341 = vadd.f32 0.0, %v340
    %342 = vmatmul.f32.gmra.mxu0 %v173
    %v343 = vpop.f32.mrf.mxu0
    %v344 = vadd.f32 0.0, %v343
    %345 = vmatmul.f32.gmra.mxu0 %v176
    %v346 = vpop.f32.mrf.mxu0
    %v347 = vadd.f32 0.0, %v346
    %348 = vmatmul.f32.gmra.mxu0 %v179
    %v349 = vpop.f32.mrf.mxu0
    %v350 = vadd.f32 0.0, %v349
    %351 = vmatmul.f32.gmra.mxu0 %v182
    %v352 = vpop.f32.mrf.mxu0
    %v353 = vadd.f32 0.0, %v352
    %354 = vmatmul.f32.gmra.mxu0 %v185
    %v355 = vpop.f32.mrf.mxu0
    %v356 = vadd.f32 0.0, %v355
    %357 = vmatmul.f32.gmra.mxu0 %v188
    %v358 = vpop.f32.mrf.mxu0
    %v359 = vadd.f32 0.0, %v358
    %360 = vmatmul.f32.gmra.mxu0 %v191
    %v361 = vpop.f32.mrf.mxu0
    %v362 = vadd.f32 0.0, %v361
    %363 = vmatmul.f32.gmra.mxu0 %v194
    %v364 = vpop.f32.mrf.mxu0
    %v365 = vadd.f32 0.0, %v364
    %366 = vmatmul.f32.gmra.mxu0 %v197
    %v367 = vpop.f32.mrf.mxu0
    %v368 = vadd.f32 0.0, %v367
    %369 = vmatmul.f32.gmra.mxu0 %v200
    %v370 = vpop.f32.mrf.mxu0
    %v371 = vadd.f32 0.0, %v370
    %372 = vmatmul.f32.gmra.mxu0 %v203
    %v373 = vpop.f32.mrf.mxu0
    %v374 = vadd.f32 0.0, %v373
    %375 = vmatmul.f32.gmra.mxu0 %v206
    %v376 = vpop.f32.mrf.mxu0
    %v377 = vadd.f32 0.0, %v376
    %378 = vmatmul.f32.gmra.mxu0 %v209
    %v379 = vpop.f32.mrf.mxu0
    %v380 = vadd.f32 0.0, %v379
    %381 = vmatmul.f32.gmra.mxu0 %v212
    %v382 = vpop.f32.mrf.mxu0
    %v383 = vadd.f32 0.0, %v382
    %384 = vmatmul.f32.gmra.mxu0 %v215
    %v385 = vpop.f32.mrf.mxu0
    %v386 = vadd.f32 0.0, %v385
    %387 = vmatmul.f32.gmra.mxu0 %v218
    %v388 = vpop.f32.mrf.mxu0
    %v389 = vadd.f32 0.0, %v388
    %390 = vmatmul.f32.gmra.mxu0 %v221
    %v391 = vpop.f32.mrf.mxu0
    %v392 = vadd.f32 0.0, %v391
    %393 = vdwg.mxu0
    %v394 = vmax.f32 %v245, 0.0
    %v395 = vmax.f32 %v248, 0.0
    %v396 = vmax.f32 %v251, 0.0
    %v397 = vmax.f32 %v254, 0.0
    %v398 = vmax.f32 %v257, 0.0
    %v399 = vmax.f32 %v260, 0.0
    %v400 = vmax.f32 %v263, 0.0
    %v401 = vmax.f32 %v266, 0.0
    %v402 = vmax.f32 %v269, 0.0
    %v403 = vmax.f32 %v272, 0.0
    %v404 = vmax.f32 %v275, 0.0
    %v405 = vmax.f32 %v278, 0.0
    %v406 = vmax.f32 %v281, 0.0
    %v407 = vmax.f32 %v284, 0.0
    %v408 = vmax.f32 %v287, 0.0
    %v409 = vmax.f32 %v290, 0.0
    %v410 = vmax.f32 %v293, 0.0
    %v411 = vmax.f32 %v296, 0.0
    %v412 = vmax.f32 %v299, 0.0
    %v413 = vmax.f32 %v302, 0.0
    %v414 = vmax.f32 %v305, 0.0
    %v415 = vmax.f32 %v308, 0.0
    %v416 = vmax.f32 %v311, 0.0
    %v417 = vmax.f32 %v314, 0.0
    %v418 = vmax.f32 %v317, 0.0
    %v419 = vmax.f32 %v320, 0.0
    %v420 = vmax.f32 %v323, 0.0
    %v421 = vmax.f32 %v326, 0.0
    %v422 = vmax.f32 %v329, 0.0
    %v423 = vmax.f32 %v332, 0.0
    %v424 = vmax.f32 %v335, 0.0
    %v425 = vmax.f32 %v338, 0.0
    %v426 = vmax.f32 %v341, 0.0
    %v427 = vmax.f32 %v344, 0.0
    %v428 = vmax.f32 %v347, 0.0
    %v429 = vmax.f32 %v350, 0.0
    %v430 = vmax.f32 %v353, 0.0
    %v431 = vmax.f32 %v356, 0.0
    %v432 = vmax.f32 %v359, 0.0
    %v433 = vmax.f32 %v362, 0.0
    %v434 = vmax.f32 %v365, 0.0
    %v435 = vmax.f32 %v368, 0.0
    %v436 = vmax.f32 %v371, 0.0
    %v437 = vmax.f32 %v374, 0.0
    %v438 = vmax.f32 %v377, 0.0
    %v439 = vmax.f32 %v380, 0.0
    %v440 = vmax.f32 %v383, 0.0
    %v441 = vmax.f32 %v386, 0.0
    %v442 = vmax.f32 %v389, 0.0
    %v443 = vmax.f32 %v392, 0.0
    %vm444 = vcmask 523264
    %v445 = vsel %vm444, %v394, 0.0
    %v446 = vsel %vm444, %v395, 0.0
    %v447 = vadd.f32 %v445, %v446
    %v448 = vsel %vm444, %v396, 0.0
    %v449 = vadd.f32 %v447, %v448
    %v450 = vsel %vm444, %v397, 0.0
    %v451 = vadd.f32 %v449, %v450
    %v452 = vsel %vm444, %v398, 0.0
    %v453 = vadd.f32 %v451, %v452
    %v454 = vsel %vm444, %v399, 0.0
    %v455 = vadd.f32 %v453, %v454
    %v456 = vsel %vm444, %v400, 0.0
    %v457 = vadd.f32 %v455, %v456
    %v458 = vsel %vm444, %v401, 0.0
    %v459 = vadd.f32 %v457, %v458
    %v460 = vsel %vm444, %v402, 0.0
    %v461 = vadd.f32 %v459, %v460
    %v462 = vsel %vm444, %v403, 0.0
    %v463 = vadd.f32 %v461, %v462
    %v464 = vsel %vm444, %v404, 0.0
    %v465 = vadd.f32 %v463, %v464
    %v466 = vsel %vm444, %v405, 0.0
    %v467 = vadd.f32 %v465, %v466
    %v468 = vsel %vm444, %v406, 0.0
    %v469 = vadd.f32 %v467, %v468
    %v470 = vsel %vm444, %v407, 0.0
    %v471 = vadd.f32 %v469, %v470
    %v472 = vsel %vm444, %v408, 0.0
    %v473 = vadd.f32 %v471, %v472
    %v474 = vsel %vm444, %v409, 0.0
    %v475 = vadd.f32 %v473, %v474
    %v476 = vsel %vm444, %v410, 0.0
    %v477 = vadd.f32 %v475, %v476
    %v478 = vsel %vm444, %v411, 0.0
    %v479 = vadd.f32 %v477, %v478
    %v480 = vsel %vm444, %v412, 0.0
    %v481 = vadd.f32 %v479, %v480
    %v482 = vsel %vm444, %v413, 0.0
    %v483 = vadd.f32 %v481, %v482
    %v484 = vsel %vm444, %v414, 0.0
    %v485 = vadd.f32 %v483, %v484
    %v486 = vsel %vm444, %v415, 0.0
    %v487 = vadd.f32 %v485, %v486
    %v488 = vsel %vm444, %v416, 0.0
    %v489 = vadd.f32 %v487, %v488
    %v490 = vsel %vm444, %v417, 0.0
    %v491 = vadd.f32 %v489, %v490
    %v492 = vsel %vm444, %v418, 0.0
    %v493 = vadd.f32 %v491, %v492
    %v494 = vrot.slane %v493, 4
    %v495 = vadd.f32 %v493, %v494
    %v496 = vrot.slane %v495, 2
    %v497 = vadd.f32 %v495, %v496
    %v498 = vrot.slane %v497, 1
    %v499 = vadd.f32 %v497, %v498
    %v500 = vsel %vm444, %v419, 0.0
    %v501 = vsel %vm444, %v420, 0.0
    %v502 = vadd.f32 %v500, %v501
    %v503 = vsel %vm444, %v421, 0.0
    %v504 = vadd.f32 %v502, %v503
    %v505 = vsel %vm444, %v422, 0.0
    %v506 = vadd.f32 %v504, %v505
    %v507 = vsel %vm444, %v423, 0.0
    %v508 = vadd.f32 %v506, %v507
    %v509 = vsel %vm444, %v424, 0.0
    %v510 = vadd.f32 %v508, %v509
    %v511 = vsel %vm444, %v425, 0.0
    %v512 = vadd.f32 %v510, %v511
    %v513 = vsel %vm444, %v426, 0.0
    %v514 = vadd.f32 %v512, %v513
    %v515 = vsel %vm444, %v427, 0.0
    %v516 = vadd.f32 %v514, %v515
    %v517 = vsel %vm444, %v428, 0.0
    %v518 = vadd.f32 %v516, %v517
    %v519 = vsel %vm444, %v429, 0.0
    %v520 = vadd.f32 %v518, %v519
    %v521 = vsel %vm444, %v430, 0.0
    %v522 = vadd.f32 %v520, %v521
    %v523 = vsel %vm444, %v431, 0.0
    %v524 = vadd.f32 %v522, %v523
    %v525 = vsel %vm444, %v432, 0.0
    %v526 = vadd.f32 %v524, %v525
    %v527 = vsel %vm444, %v433, 0.0
    %v528 = vadd.f32 %v526, %v527
    %v529 = vsel %vm444, %v434, 0.0
    %v530 = vadd.f32 %v528, %v529
    %v531 = vsel %vm444, %v435, 0.0
    %v532 = vadd.f32 %v530, %v531
    %v533 = vsel %vm444, %v436, 0.0
    %v534 = vadd.f32 %v532, %v533
    %v535 = vsel %vm444, %v437, 0.0
    %v536 = vadd.f32 %v534, %v535
    %v537 = vsel %vm444, %v438, 0.0
    %v538 = vadd.f32 %v536, %v537
    %v539 = vsel %vm444, %v439, 0.0
    %v540 = vadd.f32 %v538, %v539
    %v541 = vsel %vm444, %v440, 0.0
    %v542 = vadd.f32 %v540, %v541
    %v543 = vsel %vm444, %v441, 0.0
    %v544 = vadd.f32 %v542, %v543
    %v545 = vsel %vm444, %v442, 0.0
    %v546 = vadd.f32 %v544, %v545
    %v547 = vsel %vm444, %v443, 0.0
    %v548 = vadd.f32 %v546, %v547
    %v549 = vrot.slane %v548, 4
    %v550 = vadd.f32 %v548, %v549
    %v551 = vrot.slane %v550, 2
    %v552 = vadd.f32 %v550, %v551
    %v553 = vrot.slane %v552, 1
    %v554 = vadd.f32 %v552, %v553
    %v555 = vld [vmem:[%s2] sm:$0xff]
    %v556 = vld [vmem:[%s2 + $0x8] sm:$0xff]
    %v557 = vld [vmem:[%s2 + $0x10] sm:$0xff]
    %v558 = vld [vmem:[%s2 + $0x18] sm:$0xff]
    %v559 = vld [vmem:[%s2 + $0x20] sm:$0xff]
    %v560 = vld [vmem:[%s2 + $0x28] sm:$0xff]
    %v561 = vld [vmem:[%s2 + $0x30] sm:$0xff]
    %v562 = vld [vmem:[%s2 + $0x38] sm:$0xff]
    %v563 = vld [vmem:[%s3] sm:$0x1]
    %v565 = vperm.slane %v563, 0
    %vm569 = vcmask 1041409
    %v570 = vsel %vm569, %v554, %v499
    %v571 = vsel %vm444, %v570, 0
    %573 = vmatpush.msra.mxu0 0.0
    %574 = vmatpush.msra.mxu0 0.0
    %575 = vmatpush.msra.mxu0 0.0
    %576 = vmatpush.msra.mxu0 0.0
    %577 = vmatpush.msra.mxu0 0.0
    %578 = vmatpush.msra.mxu0 0.0
    %579 = vmatpush.msra.mxu0 0.0
    %580 = vmatpush.msra.mxu0 0.0
    %581 = vmatpush.msra.mxu0 %v562
    %582 = vmatpush.msra.mxu0 %v561
    %583 = vmatpush.msra.mxu0 %v560
    %584 = vmatpush.msra.mxu0 %v559
    %585 = vmatpush.msra.mxu0 %v558
    %586 = vmatpush.msra.mxu0 %v557
    %587 = vmatpush.msra.mxu0 %v556
    %588 = vmatpush.msra.mxu0 %v555
    %589 = vmatmul.f32.gmra.mxu0 %v571
    %v590 = vpop.f32.mrf.mxu0
    %v591 = vadd.f32 %v565, %v590
    %592 = vdwg.mxu0
    %593 = vst [vmem:[#allocation2] sm:$0x3] %v591
    // Predicated region
    $region18: #{_model_forward.1} parent=1 // pred_check
      _
    $region19: #{_model_forward.1} parent=1 // pred_check_branch
      %595 = sbr.rel (0) target = $region21
    $region20: #{_model_forward.1} parent=1 // pred_region
      %597 = vsyncadd [#allocation3], 0
      %s599 = sshll.u32 [#allocation2], 4
      %s600 = int_to_ptr.vmem [resolvable:$true] %s599
      %s601 = sshll.u32 %s4, 4
      %s602 = int_to_ptr.hbm [resolvable:$true] %s601
      %604 = dma.vmem_to_hbm [thread:$0]  %s600, 32, %s602, [#allocation3]
    $region21: #{_model_forward.1} parent=1 // pred_fallthru
      _
    // Predicated region
    $region22: #{_model_forward.1} parent=1 // pred_check
      _
    $region23: #{_model_forward.1} parent=1 // pred_check_branch
      %606 = sbr.rel (0) target = $region25
    $region24: #{_model_forward.1} parent=1 // pred_region
      %608 = dma.done [#allocation3], 32
    $region25: #{_model_forward.1} parent=1 // pred_fallthru
      _
    %609 = vsyncpa [#allocation3], 1

</llo_original>
